<compile_context>
chip_gen: v7x
topology: tpu7x:2x2x1
jax: 0.10.0
libtpu: 0.0.40
codegen_flags: <defaults>
</compile_context>

<pallas_src>
import functools

import jax
import jax.numpy as jnp
from jax.experimental import pallas as pl
from jax.experimental.pallas import tpu as pltpu


# Leave headroom below v7x's 64 MiB physical VMEM (and its 32 MiB default scoped limit).
_VMEM_LIMIT_BYTES = 48 * 1024 * 1024
_INPUT_VMEM_BUDGET = 36 * 1024 * 1024  # 2 inputs x 2 pipeline buffers must fit here.


def _dotloss_kernel(pred_ref, tar_ref, out_ref, *, total_rows):
    i = pl.program_id(0)
    tb = pred_ref.shape[0]

    pred = pred_ref[...].astype(jnp.float32)   # [TB, D]
    tar = tar_ref[...].astype(jnp.float32)     # [TB, D]

    # Per-row reductions along the lane (feature) axis.
    dot = jnp.sum(pred * tar, axis=1, keepdims=True)       # [TB, 1]
    norm_sq = jnp.sum(tar * tar, axis=1, keepdims=True)    # [TB, 1]

    # Mask rows that fall past the true batch size (last, padded block).
    row_idx = i * tb + jax.lax.broadcasted_iota(jnp.int32, (tb, 1), 0)
    row_mask = row_idx < total_rows

    # Guard the denominator only for *padded* rows; real all-zero tar rows keep the
    # PyTorch semantics (inf/nan), which is the module's documented behavior.
    norm_safe = jnp.where(row_mask, norm_sq, jnp.float32(1.0))
    loss = dot * pl.reciprocal(norm_safe, approx=False)     # exact 1/x
    abs_loss = jnp.abs(jnp.float32(1.0) - loss)

    # Partial sum for this block (mean is finished in the wrapper, exactly once).
    out_ref[0, 0] = jnp.sum(jnp.where(row_mask, abs_loss, jnp.float32(0.0)))


def _pick_block_rows(B, D, itemsize, budget_bytes):
    """Largest row-tile such that 2 inputs x 2 pipeline buffers fit the VMEM budget."""
    bytes_per_row = 4 * D * itemsize
    tb = max(1, budget_bytes // bytes_per_row)
    if tb >= B:
        return B                      # whole batch in one block (full-dim is always legal)
    return max(8, (tb // 8) * 8)      # otherwise keep the sublane (8) alignment


def dot_loss(pred, tar, *, block_rows=None):
    """Pallas implementation of DotLoss.forward. pred, tar: [B, D]."""
    assert pred.shape == tar.shape and pred.ndim == 2
    B, D = pred.shape
    itemsize = max(jnp.dtype(pred.dtype).itemsize, jnp.dtype(tar.dtype).itemsize)

    tb = block_rows if block_rows is not None else _pick_block_rows(
        B, D, itemsize, _INPUT_VMEM_BUDGET)
    tb = min(tb, B) if tb >= B else tb
    num_blocks = -(-B // tb)

    # NOTE: for extremely large D (a single (8, D) block not fitting the budget) a
    # trailing "arbitrary" reduction axis over D with (TB, 1) scratch accumulators
    # would be needed; not required for realistic D here.

    kernel = functools.partial(_dotloss_kernel, total_rows=B)

    partials = pl.pallas_call(
        kernel,
        out_shape=jax.ShapeDtypeStruct((num_blocks, 1), jnp.float32),
        grid=(num_blocks,),
        in_specs=[
            pl.BlockSpec((tb, D), lambda i: (i, 0)),
            pl.BlockSpec((tb, D), lambda i: (i, 0)),
        ],
        out_specs=pl.BlockSpec((1, 1), lambda i: (i, 0), memory_space=pltpu.SMEM),
        compiler_params=pltpu.CompilerParams(
            dimension_semantics=("parallel",),
            vmem_limit_bytes=_VMEM_LIMIT_BYTES,
        ),
        cost_estimate=pl.CostEstimate(
            flops=4 * B * D,
            transcendentals=0,
            bytes_accessed=2 * B * D * itemsize + 4 * num_blocks,
        ),
    )(pred, tar)

    # Finish the mean exactly once (keeps it exact even when B % tb != 0).
    return jnp.sum(partials) / jnp.float32(B)


def _ref(pred, tar):
    p = pred.astype(jnp.float32)
    t = tar.astype(jnp.float32)
    loss = jnp.sum(p * t, axis=1) / jnp.sum(t * t, axis=1)
    return jnp.mean(jnp.abs(1.0 - loss))


if __name__ == "__main__":
    key = jax.random.PRNGKey(0)
    k1, k2, k3, k4 = jax.random.split(key, 4)

    # Primary test (small shapes consistent with the module).
    B, D = 8, 32
    pred = jax.random.normal(k1, (B, D), dtype=jnp.float32)
    tar = jax.random.normal(k2, (B, D), dtype=jnp.float32)

    result = dot_loss(pred, tar)
    jax.block_until_ready(result)
    assert jnp.allclose(result, _ref(pred, tar), rtol=1e-5, atol=1e-5), (
        result, _ref(pred, tar))

    # Second test: multi-block grid with a ragged last block (exercises masking / tiling).
    B2, D2 = 200, 128
    pred2 = jax.random.normal(k3, (B2, D2), dtype=jnp.float32)
    tar2 = jax.random.normal(k4, (B2, D2), dtype=jnp.float32)

    result2 = dot_loss(pred2, tar2, block_rows=64)   # 4 blocks, last one padded
    jax.block_until_ready(result2)
    assert jnp.allclose(result2, _ref(pred2, tar2), rtol=1e-5, atol=1e-5), (
        result2, _ref(pred2, tar2))

    print("KERNEL_OK")
</pallas_src>

<mosaic_0001>
module attributes {stable_mosaic.version = 11 : i64} {
  func.func @_dotloss_kernel(%arg0: i32, %arg1: memref<8x32xf32, #tpu.memory_space<vmem>>, %arg2: memref<8x32xf32, #tpu.memory_space<vmem>>, %arg3: memref<1x1xf32, #tpu.memory_space<smem>>) attributes {dimension_semantics = [#tpu.dimension_semantics<parallel>], iteration_bounds = array<i64: 1>, scalar_prefetch = 0 : i64, scratch_operands = 0 : i64, tpu.core_type = #tpu.core_type<tc>, window_params = [{transform_indices = @transform_0, window_bounds = array<i64: 8, 32>}, {transform_indices = @transform_1, window_bounds = array<i64: 8, 32>}, {transform_indices = @transform_2, window_bounds = array<i64: 1, 1>}]} {
    %c0 = arith.constant 0 : index
    %c0_0 = arith.constant 0 : index
    %0 = vector.load %arg1[%c0, %c0_0] : memref<8x32xf32, #tpu.memory_space<vmem>>, vector<8x32xf32>
    %c0_1 = arith.constant 0 : index
    %c0_2 = arith.constant 0 : index
    %1 = vector.load %arg2[%c0_1, %c0_2] : memref<8x32xf32, #tpu.memory_space<vmem>>, vector<8x32xf32>
    %2 = arith.mulf %0, %1 : vector<8x32xf32>
    %cst = arith.constant dense<0.000000e+00> : vector<8xf32>
    %3 = vector.multi_reduction <add>, %2, %cst [1] : vector<8x32xf32> to vector<8xf32>
    %4 = vector.shape_cast %3 : vector<8xf32> to vector<8x1xf32>
    %5 = arith.mulf %1, %1 : vector<8x32xf32>
    %cst_3 = arith.constant dense<0.000000e+00> : vector<8xf32>
    %6 = vector.multi_reduction <add>, %5, %cst_3 [1] : vector<8x32xf32> to vector<8xf32>
    %7 = vector.shape_cast %6 : vector<8xf32> to vector<8x1xf32>
    %c8_i32 = arith.constant 8 : i32
    %8 = arith.muli %arg0, %c8_i32 : i32
    %9 = tpu.iota {dimensions = array<i32: 0>} : vector<8x1xi32>
    %10 = vector.broadcast %8 : i32 to vector<8x1xi32>
    %11 = arith.addi %10, %9 : vector<8x1xi32>
    %c8_i32_4 = arith.constant 8 : i32
    %12 = vector.broadcast %c8_i32_4 : i32 to vector<8x1xi32>
    %13 = arith.cmpi slt, %11, %12 : vector<8x1xi32>
    %cst_5 = arith.constant 1.000000e+00 : f32
    %14 = vector.broadcast %cst_5 : f32 to vector<8x1xf32>
    %15 = arith.select %13, %7, %14 : vector<8x1xi1>, vector<8x1xf32>
    %16 = tpu.reciprocal %15 : vector<8x1xf32> -> vector<8x1xf32>
    %17 = arith.mulf %4, %16 : vector<8x1xf32>
    %cst_6 = arith.constant 1.000000e+00 : f32
    %18 = vector.broadcast %cst_6 : f32 to vector<8x1xf32>
    %19 = arith.subf %18, %17 : vector<8x1xf32>
    %20 = math.absf %19 : vector<8x1xf32>
    %cst_7 = arith.constant 0.000000e+00 : f32
    %21 = vector.broadcast %cst_7 : f32 to vector<8x1xf32>
    %22 = arith.select %13, %20, %21 : vector<8x1xi1>, vector<8x1xf32>
    %23 = vector.shape_cast %22 : vector<8x1xf32> to vector<1x8x1xf32>
    %cst_8 = arith.constant dense<0.000000e+00> : vector<1xf32>
    %24 = vector.multi_reduction <add>, %23, %cst_8 [1, 2] : vector<1x8x1xf32> to vector<1xf32>
    %25 = vector.shape_cast %24 : vector<1xf32> to vector<1x1x1xf32>
    %26 = vector.extract %25[0, 0, 0] : f32 from vector<1x1x1xf32>
    %c0_9 = arith.constant 0 : index
    %c0_10 = arith.constant 0 : index
    %27 = memref.load %arg3[%c0_9, %c0_10] : memref<1x1xf32, #tpu.memory_space<smem>>
    memref.store %26, %arg3[%c0_9, %c0_10] : memref<1x1xf32, #tpu.memory_space<smem>>
    return
  }
  func.func @transform_0(%arg0: i32) -> (i32, i32) {
    %c0_i32 = arith.constant 0 : i32
    %c0_i32_0 = arith.constant 0 : i32
    return %arg0, %c0_i32 : i32, i32
  }
  func.func @transform_1(%arg0: i32) -> (i32, i32) {
    %c0_i32 = arith.constant 0 : i32
    %c0_i32_0 = arith.constant 0 : i32
    return %arg0, %c0_i32 : i32, i32
  }
  func.func @transform_2(%arg0: i32) -> (i32, i32) {
    %c0_i32 = arith.constant 0 : i32
    %c0_i32_0 = arith.constant 0 : i32
    return %arg0, %c0_i32 : i32, i32
  }
}

</mosaic_0001>

<llo_original>
// kernel: tpu_custom_call.1
$region0: #{tpu_custom_call.1}
  #allocation0 [shape = 'u32[]', space=smem, size = 0x4, offset = 0x4, fixed_abs, tag = 'smem constant byte address 0x4 - core index']
  #allocation1 [shape = 'u32[144,128]{1,0:T(1,128)}', space=vmem, size = 0x12000, scoped, tag = 'internal scratch']
  %s0 = inlined_call_operand.hbm [shape: f32[8,32], index: 0, kind: input, shape index: {}]
  %s1 = inlined_call_operand.hbm [shape: f32[8,32], index: 1, kind: input, shape index: {}]
  %s2 = inlined_call_operand.hbm [shape: f32[1,1], index: 2, kind: output, shape index: {}]
  %s3 = sld [smem:[#allocation0]]
  $region26: #{tpu_custom_call.1} parent=0
    _
  %s5 = ssub.s32 1, %s3
  %s6 = scalar_select 0, %s5, %s3
  $region1: #{tpu_custom_call.1} parent=0
    #allocation2 [shape = 'u8[4096]{0}', space=vmem, size = 0x1000, scoped, tag = 'input window, operand 0, single buffered']
    #allocation3 [shape = 's32[1]{0}', space=sflag, size = 0x4, scoped, tag = 'scoped memory for tpu_custom_call.1']
    #allocation4 [shape = 's32[1]{0}', space=sflag, size = 0x4, scoped, tag = 'scoped memory for tpu_custom_call.1']
    #allocation5 [shape = 'u8[4096]{0}', space=vmem, size = 0x1000, scoped, tag = 'input window, operand 1, single buffered']
    #allocation6 [shape = 's32[1]{0}', space=sflag, size = 0x4, scoped, tag = 'scoped memory for tpu_custom_call.1']
    #allocation7 [shape = 'u8[512]{0}', space=smem, size = 0x200, scoped, tag = 'output window, operand 0, single buffered']
    %7 = vsyncpa [#allocation3], 0
    %8 = vsyncpa [#allocation6], 0
    %9 = vsyncpa [#allocation4], 0
    // Predicated region
    $region2: #{tpu_custom_call.1} parent=1 // pred_check
      _
    $region3: #{tpu_custom_call.1} parent=1 // pred_check_branch
      %11 = sbr.rel (0) target = $region5
    $region4: #{tpu_custom_call.1} parent=1 // pred_region
      %s13 = ssub.s32 128, 128
      %14 = vsyncadd [#allocation3], %s13
      %s16 = sshll.u32 [#allocation2], 4
      %s17 = int_to_ptr.vmem [resolvable:$true] %s16
      %19 = dma.hbm_to_vmem [thread:$0]  %s0, 128, %s17, [#allocation3]
    $region5: #{tpu_custom_call.1} parent=1 // pred_fallthru
      _
    // Predicated region
    $region6: #{tpu_custom_call.1} parent=1 // pred_check
      _
    $region7: #{tpu_custom_call.1} parent=1 // pred_check_branch
      %21 = sbr.rel (0) target = $region9
    $region8: #{tpu_custom_call.1} parent=1 // pred_region
      %s23 = ssub.s32 128, 128
      %24 = vsyncadd [#allocation6], %s23
      %s26 = sshll.u32 [#allocation5], 4
      %s27 = int_to_ptr.vmem [resolvable:$true] %s26
      %29 = dma.hbm_to_vmem [thread:$0]  %s1, 128, %s27, [#allocation6]
    $region9: #{tpu_custom_call.1} parent=1 // pred_fallthru
      _
    // Predicated region
    $region10: #{tpu_custom_call.1} parent=1 // pred_check
      _
    $region11: #{tpu_custom_call.1} parent=1 // pred_check_branch
      %31 = sbr.rel (0) target = $region13
    $region12: #{tpu_custom_call.1} parent=1 // pred_region
      %32 = dma.done [#allocation3], 128
    $region13: #{tpu_custom_call.1} parent=1 // pred_fallthru
      _
    // Predicated region
    $region14: #{tpu_custom_call.1} parent=1 // pred_check
      _
    $region15: #{tpu_custom_call.1} parent=1 // pred_check_branch
      %34 = sbr.rel (0) target = $region17
    $region16: #{tpu_custom_call.1} parent=1 // pred_region
      %35 = dma.done [#allocation6], 128
    $region17: #{tpu_custom_call.1} parent=1 // pred_fallthru
      _
    %v36 = vld [vmem:[#allocation2] sm:$0xff]
    %v37 = vld [vmem:[#allocation5] sm:$0xff]
    %v38 = vmul.f32 %v36, %v37
    %vm39 = vcmask 261120
    %v40 = vsel %vm39, %v38, 0.0
    %41 = vadd.xlane.f32.xlu0 %v40
    %v42 = vpop.xlane.xlu0 %41
    %v43 = vmul.f32 %v37, %v37
    %v44 = vsel %vm39, %v43, 0.0
    %45 = vadd.xlane.f32.xlu0 %v44
    %v46 = vpop.xlane.xlu0 %45
    %s47 = smul.u32 0, 8
    %v48 = vlaneseq
    %v49 = vshrl.u32 %v48, 7
    %v50 = vstv %s47
    %v51 = vadd.s32 %v50, %v49
    %vm52 = vcmp.lt.s32.totalorder %v51, 8
    %v53 = vsel %vm52, %v46, 1.0
    %v54 = vrcp.pop %v53
    %v55 = vmul.f32 %v42, %v54
    %v56 = vsub.f32 1.0, %v55
    %v57 = vand.u32 2147483647, %v56
    %v58 = vsel %vm52, %v57, 0.0
    %vm59 = vcmask 7168
    %v60 = vsel %vm59, %v58, 0.0
    %61 = vadd.xlane.f32.xlu0 %v60
    %v62 = vpop.xlane.xlu0 %61
    %v63 = vrot.slane %v62, 4
    %v64 = vadd.f32 %v62, %v63
    %v65 = vrot.slane %v64, 2
    %v66 = vadd.f32 %v64, %v65
    %v67 = vrot.slane %v66, 1
    %v68 = vadd.f32 %v66, %v67
    %s69 = vtos %v68
    %s70 = scalar_lea.smem [#allocation7], 0
    %71 = sst [smem:[%s70]] %s69
    // Predicated region
    $region18: #{tpu_custom_call.1} parent=1 // pred_check
      _
    $region19: #{tpu_custom_call.1} parent=1 // pred_check_branch
      %73 = sbr.rel (0) target = $region21
    $region20: #{tpu_custom_call.1} parent=1 // pred_region
      %s75 = ssub.s32 16, 16
      %76 = vsyncadd [#allocation4], %s75
      %79 = dma.smem_to_hbm [#allocation7], 16, %s2, [#allocation4]
    $region21: #{tpu_custom_call.1} parent=1 // pred_fallthru
      _
    // Predicated region
    $region22: #{tpu_custom_call.1} parent=1 // pred_check
      _
    $region23: #{tpu_custom_call.1} parent=1 // pred_check_branch
      %81 = sbr.rel (0) target = $region25
    $region24: #{tpu_custom_call.1} parent=1 // pred_region
      %82 = dma.done [#allocation4], 16
    $region25: #{tpu_custom_call.1} parent=1 // pred_fallthru
      _
    %83 = sfence
    %84 = vsyncpa [#allocation3], 1
    %85 = vsyncpa [#allocation6], 1
    %86 = vsyncpa [#allocation4], 1

</llo_original>
